<compile_context>
chip_gen: v5e
topology: v5e:2x2
jax: 0.10.0
libtpu: 0.0.40
codegen_flags: <defaults>
</compile_context>

<pallas_src>
import math

import numpy as np
import jax
import jax.numpy as jnp
from jax import lax
from jax.experimental import pallas as pl
from jax.experimental.pallas import tpu as pltpu


# ------------------------------ small helpers -------------------------------

def _round_up(x, m):
    return ((x + m - 1) // m) * m


def _tiling(size, max_tile, align):
    """Return (padded_size, tile) with tile % align == 0 and tile | padded."""
    size = max(int(size), 1)
    padded = _round_up(size, align)
    if padded <= max_tile:
        return padded, padded
    padded = _round_up(size, max_tile)
    return padded, max_tile


def _choose_batch_tiles(n, max_tile=256):
    """Pick (n_pad, tn) with >= 2 grid steps when possible (keeps both v7x
    TensorCores busy under the 'parallel' n axis); tn always a multiple of 8."""
    n_pad = _round_up(max(int(n), 1), 8)
    if n_pad <= 8:
        return 16, 8
    tn = min(max_tile, _round_up((n_pad + 1) // 2, 8))
    n_pad = _round_up(n_pad, tn)
    return n_pad, tn


def _pad_rows(x, rows):
    return jnp.pad(x, ((0, rows - x.shape[0]), (0, 0)))


# ----------------------------- Pallas kernels -------------------------------

def _clf_xw_kernel(x_ref, wc_ref, bc_ref, wi_ref, s_ref, xw_ref):
    # x_ref : (tr, F)        bf16 batch/pos features
    # wc_ref: (C_pad, F)     bf16 label_clf weight (rows >=2 are zero)
    # bc_ref: (C_pad, 1)     f32  label_clf bias
    # wi_ref: (F, E3_pad)    bf16 [W1 | W2 | W3 | 0] stacked intra weights
    # s_ref : (C_pad, tr)    f32  transposed, lane-dense scores
    # xw_ref: (tr, E3_pad)   bf16 hoisted X @ [W1|W2|W3]
    x = x_ref[...]
    # transposed classifier output (classes on sublanes, rows on lanes):
    # s[c, r] = sum_f wc[c, f] * x[r, f]   (trans-rhs matmul, q@k.T style)
    s = lax.dot_general(wc_ref[...], x,
                        dimension_numbers=(((1,), (1,)), ((), ())),
                        preferred_element_type=jnp.float32)
    s_ref[...] = s + bc_ref[...]
    xw = jnp.dot(x, wi_ref[...], preferred_element_type=jnp.float32)
    xw_ref[...] = xw.astype(jnp.bfloat16)


def clf_and_xw_pallas(x_bf, wc_bf, bc, wi_bf, *, max_rows_tile=4096):
    """x_bf: (R, F) bf16 -> (scores_T (C_pad, R_pad) f32, XW (R_pad, E3_pad) bf16)."""
    R, F = x_bf.shape
    c_pad = wc_bf.shape[0]
    e3_pad = wi_bf.shape[1]
    R_pad, tr = _tiling(R, max_rows_tile, 128)
    x_pad = _pad_rows(x_bf, R_pad)
    return pl.pallas_call(
        _clf_xw_kernel,
        out_shape=(jax.ShapeDtypeStruct((c_pad, R_pad), jnp.float32),
                   jax.ShapeDtypeStruct((R_pad, e3_pad), jnp.bfloat16)),
        grid_spec=pltpu.PrefetchScalarGridSpec(
            num_scalar_prefetch=0,
            grid=(R_pad // tr,),
            in_specs=[
                pl.BlockSpec((tr, F), lambda i: (i, 0)),
                pl.BlockSpec((c_pad, F), lambda i: (0, 0)),
                pl.BlockSpec((c_pad, 1), lambda i: (0, 0)),
                pl.BlockSpec((F, e3_pad), lambda i: (0, 0)),
            ],
            out_specs=[pl.BlockSpec((c_pad, tr), lambda i: (0, i)),
                       pl.BlockSpec((tr, e3_pad), lambda i: (i, 0))],
        ),
        compiler_params=pltpu.CompilerParams(
            dimension_semantics=("parallel",)),
    )(x_pad, wc_bf, bc, wi_bf)


def _agg_combine_kernel(ni_ref, nw_ref, xw_ref, self_ref, ws_ref, wr_ref, o_ref):
    # ni_ref  : (3, tn, K)        int32  selected-neighbor indices into [0, U)
    # nw_ref  : (3, tn, K)        f32    row-normalized weights (0 for dropped/pad)
    # xw_ref  : (U_pad, E3_pad)   bf16   hoisted X @ [W1|W2|W3]
    # self_ref: (tn, F)           bf16   batch-node self features
    # ws_ref  : (F, E_pad)        bf16   inter weight rows [:F]
    # wr_ref  : (3, E3_pad, E_pad) bf16  inter weight rows [F:], relation-selective
    # o_ref   : (tn, E_pad)       f32    lane-dense output
    n_rel, tn, k_max = ni_ref.shape
    u_pad = xw_ref.shape[0]
    xw = xw_ref[...]
    iota_u = lax.broadcasted_iota(jnp.int32, (tn, u_pad), 1)

    # split-matmul inter combine (no concatenate): self-feature part first.
    out = jnp.dot(self_ref[...], ws_ref[...],
                  preferred_element_type=jnp.float32)                 # (tn, E_pad)

    for r in range(n_rel):
        idx = ni_ref[r]                                               # (tn, K)
        w = nw_ref[r]                                                 # (tn, K)
        # Rebuild the (top-k filtered, row-normalized) adjacency tile in VMEM
        # from the compact index/weight table -- nothing dense comes from HBM.
        adj = jnp.zeros((tn, u_pad), jnp.float32)
        for j in range(k_max):
            adj = adj + jnp.where(iota_u == idx[:, j:j + 1], w[:, j:j + 1], 0.0)
        # Intra aggregation against the pre-computed XW slab; wr_ref[r] is zero
        # outside rows [r*E:(r+1)*E], so it selects relation r's slab without
        # any in-kernel lane slicing or concatenation.
        agg = jnp.dot(adj.astype(jnp.bfloat16), xw,
                      preferred_element_type=jnp.float32)             # (tn, E3_pad)
        agg = jnp.maximum(agg, 0.0).astype(jnp.bfloat16)
        out = out + jnp.dot(agg, wr_ref[r], preferred_element_type=jnp.float32)

    o_ref[...] = jnp.maximum(out, 0.0)


def agg_combine_pallas(neigh_idx, neigh_w, xw, self_bf, ws_bf, wr_bf, *, tn):
    n_rel, n_pad, k_max = neigh_idx.shape
    u_pad, e3_pad = xw.shape
    F = self_bf.shape[1]
    e_pad = ws_bf.shape[1]
    assert n_pad % tn == 0
    return pl.pallas_call(
        _agg_combine_kernel,
        out_shape=jax.ShapeDtypeStruct((n_pad, e_pad), jnp.float32),
        grid_spec=pltpu.PrefetchScalarGridSpec(
            num_scalar_prefetch=0,
            grid=(n_pad // tn,),
            in_specs=[
                pl.BlockSpec((n_rel, tn, k_max), lambda i: (0, i, 0)),
                pl.BlockSpec((n_rel, tn, k_max), lambda i: (0, i, 0)),
                pl.BlockSpec((u_pad, e3_pad), lambda i: (0, 0)),
                pl.BlockSpec((tn, F), lambda i: (i, 0)),
                pl.BlockSpec((F, e_pad), lambda i: (0, 0)),
                pl.BlockSpec((n_rel, e3_pad, e_pad), lambda i: (0, 0, 0)),
            ],
            out_specs=pl.BlockSpec((tn, e_pad), lambda i: (i, 0)),
        ),
        compiler_params=pltpu.CompilerParams(
            dimension_semantics=("parallel",)),
    )(neigh_idx, neigh_w, xw, self_bf, ws_bf, wr_bf)


# ------------------- on-device neighbor filtering (jnp) ----------------------

def _topk_filter(scores_col, center_idx, neigh_idx, neigh_mask, num_sample):
    """CARE-GNN style neighbor filtering, fully on device.

    Keeps, per relation / batch node, the num_sample neighbors whose label-aware
    score is closest to the center node's; returns normalized weights with the
    same (n_rel, n, max_deg) layout as neigh_idx (0 for dropped / padded)."""
    BIG = 1e9
    d_max = neigh_idx.shape[-1]
    center = scores_col[center_idx]                              # (n,)
    neigh_s = scores_col[neigh_idx]                              # (R, n, D)
    dist = jnp.abs(neigh_s - center[None, :, None])
    tie = jnp.arange(d_max, dtype=jnp.float32) * 1e-7            # index tie-break
    dist = jnp.where(neigh_mask, dist, BIG) + tie
    # single sort + threshold against the k-th smallest value
    kth = jnp.take_along_axis(
        jnp.sort(dist, axis=-1),
        jnp.clip(num_sample - 1, 0, d_max - 1)[..., None], axis=-1)
    keep = (dist <= kth) & neigh_mask
    w = keep.astype(jnp.float32)
    w = w / jnp.maximum(jnp.sum(w, axis=-1, keepdims=True), 1.0)
    return w


# --------------------------- parameter helpers -------------------------------

def xavier_uniform(key, shape):
    fan_in, fan_out = shape[0], shape[1]
    bound = math.sqrt(6.0 / (fan_in + fan_out))
    return jax.random.uniform(key, shape, jnp.float32, -bound, bound)


# ------------------------------- InterAgg ------------------------------------

class InterAggPallas:
    """JAX/Pallas re-implementation of InterAgg.forward."""

    def __init__(self, features, feature_dim, embed_dim, train_pos, adj_lists, key):
        self.features = features                     # (N, feat_dim) lookup table
        self.feat_dim = feature_dim
        self.embed_dim = embed_dim
        self.train_pos = list(train_pos)
        self.adj_lists = adj_lists                   # list of 3 dicts: node -> set
        self.thresholds = [0.5, 0.5, 0.5]
        self.n_rel = len(adj_lists)

        k_w, k_clf_w, k_clf_b, k_i1, k_i2, k_i3 = jax.random.split(key, 6)
        # nn.Parameter((embed_dim*3 + feat_dim, embed_dim)), xavier_uniform_
        self.weight = xavier_uniform(
            k_w, (self.embed_dim * self.n_rel + self.feat_dim, self.embed_dim))
        # nn.Linear(feat_dim, 2): weight (2, feat_dim), bias (2,)
        bnd = 1.0 / math.sqrt(self.feat_dim)
        self.clf_w = jax.random.uniform(k_clf_w, (2, self.feat_dim), jnp.float32, -bnd, bnd)
        self.clf_b = jax.random.uniform(k_clf_b, (2,), jnp.float32, -bnd, bnd)
        # TODO(synk): intraggs are external modules passed into InterAgg.__init__;
        # here we use a deterministic mean-aggregate IntraAgg stand-in with one
        # xavier-initialized (feat_dim, embed_dim) weight per relation.
        self.intra_w = [xavier_uniform(k, (self.feat_dim, self.embed_dim))
                        for k in (k_i1, k_i2, k_i3)]

        # ---- pre-padded bf16 device parameters (built once) ----
        E, F, n_rel = self.embed_dim, self.feat_dim, self.n_rel
        self.e_pad = _round_up(E, 128)
        self.e3_pad = _round_up(n_rel * E, 128)
        self.c_pad = 8

        wc = jnp.zeros((self.c_pad, F), jnp.float32).at[:2].set(self.clf_w)
        self.wc_bf = wc.astype(jnp.bfloat16)
        self.bc = jnp.zeros((self.c_pad, 1), jnp.float32).at[:2, 0].set(self.clf_b)

        wi = jnp.zeros((F, self.e3_pad), jnp.float32)
        for r in range(n_rel):
            wi = wi.at[:, r * E:(r + 1) * E].set(self.intra_w[r])
        self.wi_bf = wi.astype(jnp.bfloat16)

        ws = jnp.zeros((F, self.e_pad), jnp.float32).at[:, :E].set(self.weight[:F])
        self.ws_bf = ws.astype(jnp.bfloat16)

        wr = jnp.zeros((n_rel, self.e3_pad, self.e_pad), jnp.float32)
        for r in range(n_rel):
            wr = wr.at[r, r * E:(r + 1) * E, :E].set(
                self.weight[F + r * E:F + (r + 1) * E])
        self.wr_bf = wr.astype(jnp.bfloat16)

    def forward(self, nodes, labels, train_flag=True):
        nodes = [int(v) for v in nodes]
        n_rel = self.n_rel
        n = len(nodes)

        # ---- graph bookkeeping (host: pure set/dict work, no device data) ----
        to_neighs = [[set(adj[v]) for v in nodes] for adj in self.adj_lists]
        unique_nodes = set.union(*[set.union(*rel) for rel in to_neighs], set(nodes))
        unique_list = list(unique_nodes)
        id_mapping = {nid: i for i, nid in enumerate(unique_list)}
        U = len(unique_list)

        max_deg = max(1, max(len(s) for rel in to_neighs for s in rel))
        neigh_idx = np.zeros((n_rel, n, max_deg), np.int32)
        neigh_mask = np.zeros((n_rel, n, max_deg), bool)
        num_sample = np.zeros((n_rel, n), np.int32)
        for r in range(n_rel):
            for i, neighs in enumerate(to_neighs[r]):
                ids = [id_mapping[v] for v in neighs]
                d = len(ids)
                neigh_idx[r, i, :d] = ids
                neigh_mask[r, i, :d] = True
                num_sample[r, i] = math.ceil(d * self.thresholds[r])
        center_idx = np.asarray([id_mapping[v] for v in nodes], np.int32)

        U_pad = _round_up(U, 128)
        n_pad, tn = _choose_batch_tiles(n)

        # ---- feature gathers (device), bf16 once for all kernel inputs ----
        batch_features = self.features[jnp.asarray(unique_list, jnp.int32)]
        self_feats_bf = _pad_rows(
            self.features[jnp.asarray(nodes, jnp.int32)].astype(jnp.bfloat16), n_pad)

        # ---- (1) fused label_clf (transposed, lane-dense) + hoisted XW kernel ----
        if train_flag and len(self.train_pos) > 0:
            pos_features = self.features[jnp.asarray(self.train_pos, jnp.int32)]
            clf_in = jnp.concatenate([batch_features, pos_features], axis=0)
        else:
            clf_in = batch_features
        scores_t, xw_all = clf_and_xw_pallas(
            clf_in.astype(jnp.bfloat16), self.wc_bf, self.bc, self.wi_bf)

        if train_flag and len(self.train_pos) > 0:
            pos_scores = scores_t[:2, U:U + len(self.train_pos)].T  # noqa: F841
            # TODO(synk): pos_scores feed the adaptive-threshold RL update inside
            # the external IntraAgg modules; not reproducible without them.
        center_idx_j = jnp.asarray(center_idx, jnp.int32)
        center_scores = scores_t[:2, center_idx_j].T                # (n, 2)

        # ---- neighbor filtering (device; one sort + k-th threshold) ----
        # TODO(synk): the reference ranks by softmaxed class probability inside the
        # external IntraAgg modules; we use the raw logit column as before.
        neigh_idx_j = jnp.asarray(neigh_idx)
        neigh_w = _topk_filter(
            scores_t[0, :], center_idx_j, neigh_idx_j,
            jnp.asarray(neigh_mask), jnp.asarray(num_sample))

        ni_pad = jnp.zeros((n_rel, n_pad, max_deg), jnp.int32
                           ).at[:, :n, :].set(neigh_idx_j)
        nw_pad = jnp.zeros((n_rel, n_pad, max_deg), jnp.float32
                           ).at[:, :n, :].set(neigh_w)

        # ---- (2) fused intra(x3) + inter-combine Pallas kernel ----
        # TODO(synk): for very high-degree graphs the unrolled in-kernel one-hot
        # build should become a gather / segment-sum formulation.
        out = agg_combine_pallas(
            ni_pad, nw_pad, xw_all[:U_pad], self_feats_bf,
            self.ws_bf, self.wr_bf, tn=tn)

        combined = out[:n, :self.embed_dim].T      # PyTorch layout (embed_dim, n)
        return combined, center_scores


# --------------------------------- main ---------------------------------------

if __name__ == "__main__":
    N = 64          # total nodes in the graph
    FEAT_DIM = 32
    EMBED_DIM = 16
    N_BATCH = 8

    key = jax.random.PRNGKey(0)
    k_feat, k_adj, k_params = jax.random.split(key, 3)

    # node feature table (stands in for the `features` embedding module)
    features = jax.random.normal(k_feat, (N, FEAT_DIM), jnp.float32)

    # three synthetic single-relation adjacency lists, 4 random neighbors/node
    adj_idx = np.asarray(jax.random.randint(k_adj, (3, N, 4), 0, N))
    adj_lists = [
        {node: set(int(v) for v in adj_idx[r, node]) for node in range(N)}
        for r in range(3)
    ]

    train_pos = [1, 3, 5, 7]
    nodes = list(range(0, 2 * N_BATCH, 2))          # 8 batch node ids
    labels = np.zeros(len(nodes), np.int64)         # unused by forward math

    model = InterAggPallas(features, FEAT_DIM, EMBED_DIM, train_pos, adj_lists, k_params)
    combined, center_scores = model.forward(nodes, labels, train_flag=True)

    combined = jax.block_until_ready(combined)
    center_scores = jax.block_until_ready(center_scores)

    assert combined.shape == (EMBED_DIM, N_BATCH)
    assert center_scores.shape == (N_BATCH, 2)
    assert bool(jnp.all(jnp.isfinite(combined)))
    assert bool(jnp.all(combined >= 0.0))           # relu output
    print("KERNEL_OK")
</pallas_src>

<mosaic_0001>
module attributes {stable_mosaic.version = 11 : i64} {
  func.func @_clf_xw_kernel(%arg0: i32, %arg1: memref<128x32xbf16, #tpu.memory_space<vmem>>, %arg2: memref<8x32xbf16, #tpu.memory_space<vmem>>, %arg3: memref<8x1xf32, #tpu.memory_space<vmem>>, %arg4: memref<32x128xbf16, #tpu.memory_space<vmem>>, %arg5: memref<8x128xf32, #tpu.memory_space<vmem>>, %arg6: memref<128x128xbf16, #tpu.memory_space<vmem>>) attributes {dimension_semantics = [#tpu.dimension_semantics<parallel>], iteration_bounds = array<i64: 1>, scalar_prefetch = 0 : i64, scratch_operands = 0 : i64, tpu.core_type = #tpu.core_type<tc>, window_params = [{transform_indices = @transform_0, window_bounds = array<i64: 128, 32>}, {pipeline_mode = #tpu.pipeline_mode<synchronous>, transform_indices = @transform_1, window_bounds = array<i64: 8, 32>}, {pipeline_mode = #tpu.pipeline_mode<synchronous>, transform_indices = @transform_2, window_bounds = array<i64: 8, 1>}, {pipeline_mode = #tpu.pipeline_mode<synchronous>, transform_indices = @transform_3, window_bounds = array<i64: 32, 128>}, {transform_indices = @transform_4, window_bounds = array<i64: 8, 128>}, {transform_indices = @transform_5, window_bounds = array<i64: 128, 128>}]} {
    %c0 = arith.constant 0 : index
    %c0_0 = arith.constant 0 : index
    %0 = vector.load %arg1[%c0, %c0_0] : memref<128x32xbf16, #tpu.memory_space<vmem>>, vector<128x32xbf16>
    %c0_1 = arith.constant 0 : index
    %c0_2 = arith.constant 0 : index
    %1 = vector.load %arg2[%c0_1, %c0_2] : memref<8x32xbf16, #tpu.memory_space<vmem>>, vector<8x32xbf16>
    %cst = arith.constant dense<0.000000e+00> : vector<8x128xf32>
    %2 = tpu.matmul %1, %0, %cst {dimension_numbers = #tpu.dot_dimension_numbers<[1], [1], [0], [0], [0, 0, 1, 0], [], []>} : vector<8x32xbf16>, vector<128x32xbf16>, vector<8x128xf32> -> vector<8x128xf32>
    %c0_3 = arith.constant 0 : index
    %c0_4 = arith.constant 0 : index
    %3 = vector.load %arg3[%c0_3, %c0_4] : memref<8x1xf32, #tpu.memory_space<vmem>>, vector<8x1xf32>
    %4 = vector.broadcast %3 : vector<8x1xf32> to vector<8x128xf32>
    %5 = arith.addf %2, %4 : vector<8x128xf32>
    %c0_5 = arith.constant 0 : index
    %c0_6 = arith.constant 0 : index
    %6 = vector.load %arg5[%c0_5, %c0_6] : memref<8x128xf32, #tpu.memory_space<vmem>>, vector<8x128xf32>
    tpu.vector_store %arg5[%c0_5, %c0_6], %5 {strides = array<i32>} : memref<8x128xf32, #tpu.memory_space<vmem>>, vector<8x128xf32>,
    %c0_7 = arith.constant 0 : index
    %c0_8 = arith.constant 0 : index
    %7 = vector.load %arg4[%c0_7, %c0_8] : memref<32x128xbf16, #tpu.memory_space<vmem>>, vector<32x128xbf16>
    %cst_9 = arith.constant dense<0.000000e+00> : vector<128x128xf32>
    %8 = tpu.matmul %0, %7, %cst_9 {dimension_numbers = #tpu.dot_dimension_numbers<[1], [0], [0], [1], [0, 0, 1, 1], [], []>} : vector<128x32xbf16>, vector<32x128xbf16>, vector<128x128xf32> -> vector<128x128xf32>
    %9 = arith.truncf %8 : vector<128x128xf32> to vector<128x128xbf16>
    %c0_10 = arith.constant 0 : index
    %c0_11 = arith.constant 0 : index
    %10 = vector.load %arg6[%c0_10, %c0_11] : memref<128x128xbf16, #tpu.memory_space<vmem>>, vector<128x128xbf16>
    tpu.vector_store %arg6[%c0_10, %c0_11], %9 {strides = array<i32>} : memref<128x128xbf16, #tpu.memory_space<vmem>>, vector<128x128xbf16>,
    return
  }
  func.func @transform_0(%arg0: i32) -> (i32, i32) {
    %c0_i32 = arith.constant 0 : i32
    %c0_i32_0 = arith.constant 0 : i32
    return %arg0, %c0_i32 : i32, i32
  }
  func.func @transform_1(%arg0: i32) -> (i32, i32) {
    %c0_i32 = arith.constant 0 : i32
    %c0_i32_0 = arith.constant 0 : i32
    %c0_i32_1 = arith.constant 0 : i32
    return %c0_i32, %c0_i32_0 : i32, i32
  }
  func.func @transform_2(%arg0: i32) -> (i32, i32) {
    %c0_i32 = arith.constant 0 : i32
    %c0_i32_0 = arith.constant 0 : i32
    %c0_i32_1 = arith.constant 0 : i32
    return %c0_i32, %c0_i32_0 : i32, i32
  }
  func.func @transform_3(%arg0: i32) -> (i32, i32) {
    %c0_i32 = arith.constant 0 : i32
    %c0_i32_0 = arith.constant 0 : i32
    %c0_i32_1 = arith.constant 0 : i32
    return %c0_i32, %c0_i32_0 : i32, i32
  }
  func.func @transform_4(%arg0: i32) -> (i32, i32) {
    %c0_i32 = arith.constant 0 : i32
    %c0_i32_0 = arith.constant 0 : i32
    return %c0_i32, %arg0 : i32, i32
  }
  func.func @transform_5(%arg0: i32) -> (i32, i32) {
    %c0_i32 = arith.constant 0 : i32
    %c0_i32_0 = arith.constant 0 : i32
    return %arg0, %c0_i32 : i32, i32
  }
}

</mosaic_0001>

<llo_original>
// kernel: tpu_custom_call.1
$region0: #{tpu_custom_call.1}
  #allocation0 [shape = 'u32[]', space=smem, size = 0x4, offset = 0x4, fixed_abs, tag = 'smem constant byte address 0x4 - core index']
  #allocation1 [shape = 'u32[72,128]{1,0:T(1,128)}', space=vmem, size = 0x9000, scoped, tag = 'internal scratch']
  %s0 = inlined_call_operand.vmem [shape: bf16[128,32], index: 0, kind: input, shape index: {}]
  %s1 = inlined_call_operand.vmem [shape: bf16[8,32], index: 1, kind: input, shape index: {}]
  %s2 = inlined_call_operand.vmem [shape: f32[8,1], index: 2, kind: input, shape index: {}]
  %s3 = inlined_call_operand.vmem [shape: bf16[32,128], index: 3, kind: input, shape index: {}]
  %s4 = inlined_call_operand.hbm [shape: f32[8,128], index: 4, kind: output, shape index: {0}]
  %s5 = inlined_call_operand.hbm [shape: bf16[128,128], index: 5, kind: output, shape index: {1}]
  %6 = xla_tuple %s4, %s5
  %s7 = sld [smem:[#allocation0]]
  $region34: #{tpu_custom_call.1} parent=0
    _
  %s9 = ssub.s32 1, %s7
  %s10 = scalar_select 0, %s9, %s7
  $region1: #{tpu_custom_call.1} parent=0
    #allocation2 [shape = 'u8[4096]{0}', space=vmem, size = 0x1000, scoped, tag = 'output window, operand 0, single buffered']
    #allocation3 [shape = 's32[1]{0}', space=sflag, size = 0x4, scoped, tag = 'scoped memory for tpu_custom_call.1']
    #allocation4 [shape = 'u8[32768]{0}', space=vmem, size = 0x8000, scoped, tag = 'output window, operand 1, single buffered']
    #allocation5 [shape = 's32[1]{0}', space=sflag, size = 0x4, scoped, tag = 'scoped memory for tpu_custom_call.1']
    %11 = vsyncpa [#allocation3], 0
    %12 = vsyncpa [#allocation5], 0
    // Predicated region
    $region2: #{tpu_custom_call.1} parent=1 // pred_check
      _
    $region3: #{tpu_custom_call.1} parent=1 // pred_check_branch
      %14 = sbr.rel (0) target = $region5
    $region4: #{tpu_custom_call.1} parent=1 // pred_region
      _
    $region5: #{tpu_custom_call.1} parent=1 // pred_fallthru
      _
    // Predicated region
    $region6: #{tpu_custom_call.1} parent=1 // pred_check
      _
    $region7: #{tpu_custom_call.1} parent=1 // pred_check_branch
      %16 = sbr.rel (0) target = $region9
    $region8: #{tpu_custom_call.1} parent=1 // pred_region
      _
    $region9: #{tpu_custom_call.1} parent=1 // pred_fallthru
      _
    // Predicated region
    $region10: #{tpu_custom_call.1} parent=1 // pred_check
      _
    $region11: #{tpu_custom_call.1} parent=1 // pred_check_branch
      %18 = sbr.rel (0) target = $region13
    $region12: #{tpu_custom_call.1} parent=1 // pred_region
      _
    $region13: #{tpu_custom_call.1} parent=1 // pred_fallthru
      _
    // Predicated region
    $region14: #{tpu_custom_call.1} parent=1 // pred_check
      _
    $region15: #{tpu_custom_call.1} parent=1 // pred_check_branch
      %20 = sbr.rel (0) target = $region17
    $region16: #{tpu_custom_call.1} parent=1 // pred_region
      _
    $region17: #{tpu_custom_call.1} parent=1 // pred_fallthru
      _
    %v22 = vld [vmem:[%s0] sm:$0xf]
    %v23 = vld [vmem:[%s0 + $0x4] sm:$0xf]
    %v24 = vld [vmem:[%s0 + $0x8] sm:$0xf]
    %v25 = vld [vmem:[%s0 + $0xc] sm:$0xf]
    %v26 = vld [vmem:[%s0 + $0x10] sm:$0xf]
    %v27 = vld [vmem:[%s0 + $0x14] sm:$0xf]
    %v28 = vld [vmem:[%s0 + $0x18] sm:$0xf]
    %v29 = vld [vmem:[%s0 + $0x1c] sm:$0xf]
    %v30 = vld [vmem:[%s0 + $0x20] sm:$0xf]
    %v31 = vld [vmem:[%s0 + $0x24] sm:$0xf]
    %v32 = vld [vmem:[%s0 + $0x28] sm:$0xf]
    %v33 = vld [vmem:[%s0 + $0x2c] sm:$0xf]
    %v34 = vld [vmem:[%s0 + $0x30] sm:$0xf]
    %v35 = vld [vmem:[%s0 + $0x34] sm:$0xf]
    %v36 = vld [vmem:[%s0 + $0x38] sm:$0xf]
    %v37 = vld [vmem:[%s0 + $0x3c] sm:$0xf]
    %v38 = vld [vmem:[%s1] sm:$0xf]
    %v39 = vld [vmem:[%s2] sm:$0xff]
    %41 = vset.pattern.permute.xlu0 0
    %42 = vperm.xlu0 %41, %v39
    %v43 = vpop.permute.xlu0 %42
    %v61 = vunpack.c.l.b16 %v22
    %v62 = vunpack.c.l.b16 %v23
    %v63 = vunpack.c.l.b16 %v24
    %v64 = vunpack.c.l.b16 %v25
    %v65 = vunpack.c.l.b16 %v26
    %v66 = vunpack.c.l.b16 %v27
    %v67 = vunpack.c.l.b16 %v28
    %v68 = vunpack.c.l.b16 %v29
    %v69 = vunpack.c.l.b16 %v30
    %v70 = vunpack.c.l.b16 %v31
    %v71 = vunpack.c.l.b16 %v32
    %v72 = vunpack.c.l.b16 %v33
    %v73 = vunpack.c.l.b16 %v34
    %v74 = vunpack.c.l.b16 %v35
    %v75 = vunpack.c.l.b16 %v36
    %v76 = vunpack.c.l.b16 %v37
    %v77 = vpack.c.b16 %v62, %v61
    %v78 = vpack.c.b16 %v64, %v63
    %v79 = vpack.c.b16 %v66, %v65
    %v80 = vpack.c.b16 %v68, %v67
    %v81 = vpack.c.b16 %v70, %v69
    %v82 = vpack.c.b16 %v72, %v71
    %v83 = vpack.c.b16 %v74, %v73
    %v84 = vpack.c.b16 %v76, %v75
    %vm85 = vcmask 261120
    %v87 = vsel %vm85, %v38, 0
    %v90 = vsel %vm85, %v77, 0
    %v93 = vsel %vm85, %v78, 0
    %v96 = vsel %vm85, %v79, 0
    %v99 = vsel %vm85, %v80, 0
    %v102 = vsel %vm85, %v81, 0
    %v105 = vsel %vm85, %v82, 0
    %v108 = vsel %vm85, %v83, 0
    %v111 = vsel %vm85, %v84, 0
    %113 = vmatpush.bf16.xpose.msra.mxu0 %v111
    %114 = vmatpush.bf16.xpose.msra.mxu0 %v108
    %115 = vmatpush.bf16.xpose.msra.mxu0 %v105
    %116 = vmatpush.bf16.xpose.msra.mxu0 %v102
    %117 = vmatpush.bf16.xpose.msra.mxu0 %v99
    %118 = vmatpush.bf16.xpose.msra.mxu0 %v96
    %119 = vmatpush.bf16.xpose.msra.mxu0 %v93
    %120 = vmatpush.bf16.xpose.msra.mxu0 %v90
    %121 = vmatmul.bf16.gmra.mxu0 %v87
    %v122 = vpop.f32.mrf.mxu0
    %v123 = vadd.f32 %v43, %v122
    %v124 = vpop.f32.mrf.mxu0
    %125 = vdwg.mxu0
    %126 = vst [vmem:[#allocation2] sm:$0xff] %v123
    %v127 = vld [vmem:[%s3] sm:$0xf]
    %v128 = vld [vmem:[%s3 + $0x4] sm:$0xf]
    %v129 = vld [vmem:[%s3 + $0x8] sm:$0xf]
    %v130 = vld [vmem:[%s3 + $0xc] sm:$0xf]
    %v135 = vunpack.c.l.b16 %v127
    %v136 = vunpack.c.l.b16 %v128
    %v137 = vunpack.c.l.b16 %v129
    %v138 = vunpack.c.l.b16 %v130
    %v139 = vpack.c.b16 %v136, %v135
    %v140 = vpack.c.b16 %v138, %v137
    %143 = vmatpush.bf16.msra.mxu0 0
    %144 = vmatpush.bf16.msra.mxu0 0
    %145 = vmatpush.bf16.msra.mxu0 0
    %146 = vmatpush.bf16.msra.mxu0 0
    %147 = vmatpush.bf16.msra.mxu0 0
    %148 = vmatpush.bf16.msra.mxu0 0
    %149 = vmatpush.bf16.msra.mxu0 %v140
    %150 = vmatpush.bf16.msra.mxu0 %v139
    %151 = vmatmul.bf16.gmra.mxu0 %v90
    %v152 = vpop.f32.mrf.mxu0
    %v153 = vadd.f32 0.0, %v152
    %v154 = vpop.f32.mrf.mxu0
    %v155 = vadd.f32 0.0, %v154
    %156 = vmatmul.bf16.gmra.mxu0 %v93
    %v157 = vpop.f32.mrf.mxu0
    %v158 = vadd.f32 0.0, %v157
    %v159 = vpop.f32.mrf.mxu0
    %v160 = vadd.f32 0.0, %v159
    %161 = vmatmul.bf16.gmra.mxu0 %v96
    %v162 = vpop.f32.mrf.mxu0
    %v163 = vadd.f32 0.0, %v162
    %v164 = vpop.f32.mrf.mxu0
    %v165 = vadd.f32 0.0, %v164
    %166 = vmatmul.bf16.gmra.mxu0 %v99
    %v167 = vpop.f32.mrf.mxu0
    %v168 = vadd.f32 0.0, %v167
    %v169 = vpop.f32.mrf.mxu0
    %v170 = vadd.f32 0.0, %v169
    %171 = vmatmul.bf16.gmra.mxu0 %v102
    %v172 = vpop.f32.mrf.mxu0
    %v173 = vadd.f32 0.0, %v172
    %v174 = vpop.f32.mrf.mxu0
    %v175 = vadd.f32 0.0, %v174
    %176 = vmatmul.bf16.gmra.mxu0 %v105
    %v177 = vpop.f32.mrf.mxu0
    %v178 = vadd.f32 0.0, %v177
    %v179 = vpop.f32.mrf.mxu0
    %v180 = vadd.f32 0.0, %v179
    %181 = vmatmul.bf16.gmra.mxu0 %v108
    %v182 = vpop.f32.mrf.mxu0
    %v183 = vadd.f32 0.0, %v182
    %v184 = vpop.f32.mrf.mxu0
    %v185 = vadd.f32 0.0, %v184
    %186 = vmatmul.bf16.gmra.mxu0 %v111
    %v187 = vpop.f32.mrf.mxu0
    %v188 = vadd.f32 0.0, %v187
    %v189 = vpop.f32.mrf.mxu0
    %v190 = vadd.f32 0.0, %v189
    %191 = vdwg.mxu0
    %v192 = vpack.c.bf16 %v153, %v153
    %v193 = vpack.c.bf16 %v155, %v155
    %v194 = vpack.c.bf16 %v158, %v158
    %v195 = vpack.c.bf16 %v160, %v160
    %v196 = vpack.c.bf16 %v163, %v163
    %v197 = vpack.c.bf16 %v165, %v165
    %v198 = vpack.c.bf16 %v168, %v168
    %v199 = vpack.c.bf16 %v170, %v170
    %v200 = vpack.c.bf16 %v173, %v173
    %v201 = vpack.c.bf16 %v175, %v175
    %v202 = vpack.c.bf16 %v178, %v178
    %v203 = vpack.c.bf16 %v180, %v180
    %v204 = vpack.c.bf16 %v183, %v183
    %v205 = vpack.c.bf16 %v185, %v185
    %v206 = vpack.c.bf16 %v188, %v188
    %v207 = vpack.c.bf16 %v190, %v190
    %208 = vst [vmem:[#allocation4] sm:$0xf] %v192
    %209 = vst [vmem:[#allocation4 + $0x4] sm:$0xf] %v193
    %210 = vst [vmem:[#allocation4 + $0x8] sm:$0xf] %v194
    %211 = vst [vmem:[#allocation4 + $0xc] sm:$0xf] %v195
    %212 = vst [vmem:[#allocation4 + $0x10] sm:$0xf] %v196
    %213 = vst [vmem:[#allocation4 + $0x14] sm:$0xf] %v197
    %214 = vst [vmem:[#allocation4 + $0x18] sm:$0xf] %v198
    %215 = vst [vmem:[#allocation4 + $0x1c] sm:$0xf] %v199
    %216 = vst [vmem:[#allocation4 + $0x20] sm:$0xf] %v200
    %217 = vst [vmem:[#allocation4 + $0x24] sm:$0xf] %v201
    %218 = vst [vmem:[#allocation4 + $0x28] sm:$0xf] %v202
    %219 = vst [vmem:[#allocation4 + $0x2c] sm:$0xf] %v203
    %220 = vst [vmem:[#allocation4 + $0x30] sm:$0xf] %v204
    %221 = vst [vmem:[#allocation4 + $0x34] sm:$0xf] %v205
    %222 = vst [vmem:[#allocation4 + $0x38] sm:$0xf] %v206
    %223 = vst [vmem:[#allocation4 + $0x3c] sm:$0xf] %v207
    // Predicated region
    $region18: #{tpu_custom_call.1} parent=1 // pred_check
      _
    $region19: #{tpu_custom_call.1} parent=1 // pred_check_branch
      %225 = sbr.rel (0) target = $region21
    $region20: #{tpu_custom_call.1} parent=1 // pred_region
      %227 = vsyncadd [#allocation3], 0
      %s229 = sshll.u32 [#allocation2], 4
      %s230 = int_to_ptr.vmem [resolvable:$true] %s229
      %s231 = sshll.u32 %s4, 4
      %s232 = int_to_ptr.hbm [resolvable:$true] %s231
      %234 = dma.vmem_to_hbm [thread:$0]  %s230, 128, %s232, [#allocation3]
    $region21: #{tpu_custom_call.1} parent=1 // pred_fallthru
      _
    // Predicated region
    $region22: #{tpu_custom_call.1} parent=1 // pred_check
      _
    $region23: #{tpu_custom_call.1} parent=1 // pred_check_branch
      %236 = sbr.rel (0) target = $region25
    $region24: #{tpu_custom_call.1} parent=1 // pred_region
      %238 = vsyncadd [#allocation5], 0
      %s239 = sshll.u32 [#allocation4], 4
      %s240 = int_to_ptr.vmem [resolvable:$true] %s239
      %s241 = sshll.u32 %s5, 4
      %s242 = int_to_ptr.hbm [resolvable:$true] %s241
      %247 = dma.vmem_to_hbm [thread:$0]  %s240, 1024, %s242, [#allocation5], 64, 64, 4
    $region25: #{tpu_custom_call.1} parent=1 // pred_fallthru
      _
    // Predicated region
    $region26: #{tpu_custom_call.1} parent=1 // pred_check
      _
    $region27: #{tpu_custom_call.1} parent=1 // pred_check_branch
      %249 = sbr.rel (0) target = $region29
    $region28: #{tpu_custom_call.1} parent=1 // pred_region
      %251 = dma.done [#allocation3], 128
    $region29: #{tpu_custom_call.1} parent=1 // pred_fallthru
      _
    // Predicated region
    $region30: #{tpu_custom_call.1} parent=1 // pred_check
      _
    $region31: #{tpu_custom_call.1} parent=1 // pred_check_branch
      %253 = sbr.rel (0) target = $region33
    $region32: #{tpu_custom_call.1} parent=1 // pred_region
      %255 = dma.done [#allocation5], 1024
    $region33: #{tpu_custom_call.1} parent=1 // pred_fallthru
      _
    %256 = vsyncpa [#allocation3], 1
    %257 = vsyncpa [#allocation5], 1

</llo_original>
